<compile_context>
chip_gen: v7x
topology: tpu7x:2x2x1
jax: 0.10.0
libtpu: 0.0.40
codegen_flags: <defaults>
</compile_context>

<pallas_src>
import jax
import jax.numpy as jnp
from jax.experimental import pallas as pl
from jax.experimental.pallas import tpu as pltpu


_BN_EPS = 1e-5
_LANE = 128          # TPU vreg lane width
_TM_CAP = 2048       # max rows per grid step (~6 MiB VMEM/step at these dims)
_MIN_GRID_STEPS = 2  # v7x has 2 TensorCores; keep >=2 parallel grid steps


def _round_up(x, m):
    return (x + m - 1) // m * m


# ----------------------------------------------------------------------------
# Kernel: the whole MLP in one pallas_call, layer loop unrolled.
# ----------------------------------------------------------------------------
def _make_fused_mlp_kernel(num_layers):
    """Build a kernel with the statically-known layer count unrolled."""

    def kernel(*refs):
        # refs = (x_ref, w0, b0, w1, b1, ..., o_ref)
        x_ref = refs[0]
        o_ref = refs[-1]
        h = x_ref[...]                                    # (TM, d_in) f32
        for l in range(num_layers):
            w = refs[1 + 2 * l][...]                      # (d_l, d_{l+1}) bf16
            b = refs[2 + 2 * l][...]                      # (1, d_{l+1})  f32
            # bf16 MXU matmul with f32 accumulation; bias + ReLU stay in f32.
            z = jnp.dot(h.astype(w.dtype), w,
                        preferred_element_type=jnp.float32) + b
            h = jnp.maximum(z, 0.0)                       # ReLU (VPU, f32)
        o_ref[...] = h.astype(o_ref.dtype)

    return kernel


# ----------------------------------------------------------------------------
# Host-side constant folding + layout prep
# ----------------------------------------------------------------------------
def fold_bn_into_linear(w, b, gamma, beta, rmean, rvar, eps=_BN_EPS):
    """relu(BN(x@W + b)) == relu(x@W' + b') with the fold below (f32)."""
    s = gamma * jax.lax.rsqrt(rvar + eps)                 # (1, out)
    w_f = w * s                                           # (in, out) * (1, out)
    b_f = (b - rmean) * s + beta                          # (1, out)
    return w_f, b_f


def prepare_kernel_params(params):
    """Fold BN(eval)+bias into each Linear (f32), zero-pad hidden widths to a
    multiple of 128 lanes (numerically exact), and cast weights to bf16.
    Biases stay f32 (bias-add / ReLU run in f32 on the VPU)."""
    folded = [fold_bn_into_linear(*p) for p in params]
    num_layers = len(folded)
    prepared = []
    prev_pad = 0
    for l, (w, b) in enumerate(folded):
        if prev_pad:                                      # zero rows for the
            w = jnp.pad(w, ((0, prev_pad), (0, 0)))       # padded inputs
        dout = w.shape[1]
        pad = 0 if l == num_layers - 1 else _round_up(dout, _LANE) - dout
        if pad:                                           # zero cols: ReLU(0)=0
            w = jnp.pad(w, ((0, 0), (0, pad)))
            b = jnp.pad(b, ((0, 0), (0, pad)))
        prepared.append((w.astype(jnp.bfloat16), b.astype(jnp.float32)))
        prev_pad = pad
    return tuple(prepared)


# ----------------------------------------------------------------------------
# Wrapper: one pallas_call for the whole MLP, row-tiled "parallel" grid
# ----------------------------------------------------------------------------
def _choose_row_tile(n):
    """Row tile: big (<=2048, multiple of 256 when large) to amortize per-step
    overhead, but at least _MIN_GRID_STEPS grid steps when n allows so both
    v7x TensorCores get work."""
    if n <= 8:
        return 8
    tm = _round_up(pl.cdiv(n, _MIN_GRID_STEPS), 8)
    if tm >= 256:
        tm = _round_up(tm, 256)
    return min(tm, _TM_CAP)


def fused_mlp(h, kernel_params, out_dtype=jnp.bfloat16):
    """h: (N, d_in) f32; kernel_params: tuple of (W' bf16, b' f32) pairs."""
    n, d_in = h.shape
    num_layers = len(kernel_params)
    d_out = kernel_params[-1][0].shape[1]

    tm = _choose_row_tile(n)
    grid = (pl.cdiv(n, tm),)   # ragged last block is clipped by Pallas; no
                               # host-side pad / output slice HBM passes.

    in_specs = [pl.BlockSpec((tm, d_in), lambda i: (i, 0))]      # x row tile
    flat_args = [h]
    for (w, b) in kernel_params:
        din_l, dout_l = w.shape
        # Constant index_map -> weights/biases stay VMEM-resident across tiles.
        # NOTE: pipeline_mode=pl.Buffered(1) would single-buffer these; only
        # worth it (v7x, 64 MiB VMEM) once hidden dims grow to O(4096).
        in_specs.append(pl.BlockSpec((din_l, dout_l), lambda i: (0, 0)))
        in_specs.append(pl.BlockSpec((1, dout_l), lambda i: (0, 0)))
        flat_args += [w, b]

    return pl.pallas_call(
        _make_fused_mlp_kernel(num_layers),
        out_shape=jax.ShapeDtypeStruct((n, d_out), out_dtype),
        grid=grid,
        in_specs=in_specs,
        out_specs=pl.BlockSpec((tm, d_out), lambda i: (i, 0)),
        compiler_params=pltpu.CompilerParams(
            dimension_semantics=("parallel",)),
    )(*flat_args)


# ----------------------------------------------------------------------------
# Parameter init (matches PyTorch layer shapes / defaults, deterministic)
# ----------------------------------------------------------------------------
def init_mlp_params(hidden_units, key):
    assert len(hidden_units) >= 2
    assert hidden_units[-1] == 256
    params = []
    in_dim = hidden_units[0]
    for out_dim in hidden_units[1:]:
        key, kw, kb = jax.random.split(key, 3)
        bound = 1.0 / jnp.sqrt(in_dim)
        # PyTorch nn.Linear: W ~ U(-bound, bound), shape (out, in); store (in, out).
        w = jax.random.uniform(kw, (in_dim, out_dim), jnp.float32, -bound, bound)
        b = jax.random.uniform(kb, (1, out_dim), jnp.float32, -bound, bound)
        # PyTorch BatchNorm1d defaults.
        gamma = jnp.ones((1, out_dim), jnp.float32)
        beta = jnp.zeros((1, out_dim), jnp.float32)
        rmean = jnp.zeros((1, out_dim), jnp.float32)
        rvar = jnp.ones((1, out_dim), jnp.float32)
        params.append((w, b, gamma, beta, rmean, rvar))
        in_dim = out_dim
    return params


def _mlp_forward(x, kernel_params, out_dtype=jnp.bfloat16):
    """x: (bs, num_frames, feature_dim) -> (bs, num_frames, 256)."""
    bs, num_frames, feat = x.shape
    h = x.reshape(bs * num_frames, feat)
    h = fused_mlp(h, kernel_params, out_dtype=out_dtype)
    return h.reshape(bs, num_frames, -1)


mlp_forward = jax.jit(_mlp_forward, static_argnames="out_dtype")


def reference_forward(x, params):
    """Pure-JAX f32 reference of the UNFUSED PyTorch forward (eval mode)."""
    bs, nf, feat = x.shape
    h = x.reshape(bs * nf, feat)
    for (w, b, gamma, beta, rmean, rvar) in params:
        z = h @ w + b
        z = (z - rmean) * jax.lax.rsqrt(rvar + _BN_EPS) * gamma + beta
        h = jnp.maximum(z, 0.0)
    return h.reshape(bs, nf, -1)


if __name__ == "__main__":
    key = jax.random.PRNGKey(0)
    kx, kp = jax.random.split(key)

    hidden_units = [32, 64, 256]   # last layer must be 256 per module assert
    bs, num_frames, feature_dim = 2, 8, hidden_units[0]

    x = jax.random.normal(kx, (bs, num_frames, feature_dim), jnp.float32)
    params = init_mlp_params(hidden_units, kp)

    # One-time host-side fold (BN eval + bias), lane padding, bf16 weight cast.
    kernel_params = prepare_kernel_params(params)

    out = mlp_forward(x, kernel_params)
    out = jax.block_until_ready(out)

    ref = reference_forward(x, params)
    assert out.shape == (bs, num_frames, 256), out.shape
    # bf16 matmuls + bf16 output vs f32 reference -> loosened tolerance.
    out_f32 = out.astype(jnp.float32)
    max_err = jnp.max(jnp.abs(out_f32 - ref))
    assert jnp.allclose(out_f32, ref, atol=5e-2, rtol=5e-2), (
        "mismatch vs reference, max abs err %g" % float(max_err))

    print("KERNEL_OK")
</pallas_src>

<mosaic_0001>
module attributes {stable_mosaic.version = 11 : i64} {
  func.func @kernel(%arg0: i32, %arg1: memref<8x32xf32, #tpu.memory_space<vmem>>, %arg2: memref<32x128xbf16, #tpu.memory_space<vmem>>, %arg3: memref<1x128xf32, #tpu.memory_space<vmem>>, %arg4: memref<128x256xbf16, #tpu.memory_space<vmem>>, %arg5: memref<1x256xf32, #tpu.memory_space<vmem>>, %arg6: memref<8x256xbf16, #tpu.memory_space<vmem>>) attributes {dimension_semantics = [#tpu.dimension_semantics<parallel>], iteration_bounds = array<i64: 2>, scalar_prefetch = 0 : i64, scratch_operands = 0 : i64, tpu.core_type = #tpu.core_type<tc>, window_params = [{transform_indices = @transform_0, window_bounds = array<i64: 8, 32>}, {pipeline_mode = #tpu.pipeline_mode<synchronous>, transform_indices = @transform_1, window_bounds = array<i64: 32, 128>}, {pipeline_mode = #tpu.pipeline_mode<synchronous>, transform_indices = @transform_2, window_bounds = array<i64: 1, 128>}, {pipeline_mode = #tpu.pipeline_mode<synchronous>, transform_indices = @transform_3, window_bounds = array<i64: 128, 256>}, {pipeline_mode = #tpu.pipeline_mode<synchronous>, transform_indices = @transform_4, window_bounds = array<i64: 1, 256>}, {transform_indices = @transform_5, window_bounds = array<i64: 8, 256>}]} {
    %c0 = arith.constant 0 : index
    %c0_0 = arith.constant 0 : index
    %0 = vector.load %arg1[%c0, %c0_0] : memref<8x32xf32, #tpu.memory_space<vmem>>, vector<8x32xf32>
    %c0_1 = arith.constant 0 : index
    %c0_2 = arith.constant 0 : index
    %1 = vector.load %arg2[%c0_1, %c0_2] : memref<32x128xbf16, #tpu.memory_space<vmem>>, vector<32x128xbf16>
    %c0_3 = arith.constant 0 : index
    %c0_4 = arith.constant 0 : index
    %2 = vector.load %arg3[%c0_3, %c0_4] : memref<1x128xf32, #tpu.memory_space<vmem>>, vector<1x128xf32>
    %3 = arith.truncf %0 : vector<8x32xf32> to vector<8x32xbf16>
    %cst = arith.constant dense<0.000000e+00> : vector<8x128xf32>
    %4 = tpu.matmul %3, %1, %cst {dimension_numbers = #tpu.dot_dimension_numbers<[1], [0], [0], [1], [0, 0, 1, 1], [], []>} : vector<8x32xbf16>, vector<32x128xbf16>, vector<8x128xf32> -> vector<8x128xf32>
    %5 = vector.broadcast %2 : vector<1x128xf32> to vector<8x128xf32>
    %6 = arith.addf %4, %5 : vector<8x128xf32>
    %cst_5 = arith.constant 0.000000e+00 : f32
    %7 = vector.broadcast %cst_5 : f32 to vector<8x128xf32>
    %8 = arith.maximumf %6, %7 : vector<8x128xf32>
    %c0_6 = arith.constant 0 : index
    %c0_7 = arith.constant 0 : index
    %9 = vector.load %arg4[%c0_6, %c0_7] : memref<128x256xbf16, #tpu.memory_space<vmem>>, vector<128x256xbf16>
    %c0_8 = arith.constant 0 : index
    %c0_9 = arith.constant 0 : index
    %10 = vector.load %arg5[%c0_8, %c0_9] : memref<1x256xf32, #tpu.memory_space<vmem>>, vector<1x256xf32>
    %11 = arith.truncf %8 : vector<8x128xf32> to vector<8x128xbf16>
    %cst_10 = arith.constant dense<0.000000e+00> : vector<8x256xf32>
    %12 = tpu.matmul %11, %9, %cst_10 {dimension_numbers = #tpu.dot_dimension_numbers<[1], [0], [0], [1], [0, 0, 1, 1], [], []>} : vector<8x128xbf16>, vector<128x256xbf16>, vector<8x256xf32> -> vector<8x256xf32>
    %13 = vector.broadcast %10 : vector<1x256xf32> to vector<8x256xf32>
    %14 = arith.addf %12, %13 : vector<8x256xf32>
    %cst_11 = arith.constant 0.000000e+00 : f32
    %15 = vector.broadcast %cst_11 : f32 to vector<8x256xf32>
    %16 = arith.maximumf %14, %15 : vector<8x256xf32>
    %17 = arith.truncf %16 : vector<8x256xf32> to vector<8x256xbf16>
    %c0_12 = arith.constant 0 : index
    %c0_13 = arith.constant 0 : index
    %18 = vector.load %arg6[%c0_12, %c0_13] : memref<8x256xbf16, #tpu.memory_space<vmem>>, vector<8x256xbf16>
    tpu.vector_store %arg6[%c0_12, %c0_13], %17 {strides = array<i32>} : memref<8x256xbf16, #tpu.memory_space<vmem>>, vector<8x256xbf16>,
    return
  }
  func.func @transform_0(%arg0: i32) -> (i32, i32) {
    %c0_i32 = arith.constant 0 : i32
    %c0_i32_0 = arith.constant 0 : i32
    return %arg0, %c0_i32 : i32, i32
  }
  func.func @transform_1(%arg0: i32) -> (i32, i32) {
    %c0_i32 = arith.constant 0 : i32
    %c0_i32_0 = arith.constant 0 : i32
    %c0_i32_1 = arith.constant 0 : i32
    return %c0_i32, %c0_i32_0 : i32, i32
  }
  func.func @transform_2(%arg0: i32) -> (i32, i32) {
    %c0_i32 = arith.constant 0 : i32
    %c0_i32_0 = arith.constant 0 : i32
    %c0_i32_1 = arith.constant 0 : i32
    return %c0_i32, %c0_i32_0 : i32, i32
  }
  func.func @transform_3(%arg0: i32) -> (i32, i32) {
    %c0_i32 = arith.constant 0 : i32
    %c0_i32_0 = arith.constant 0 : i32
    %c0_i32_1 = arith.constant 0 : i32
    return %c0_i32, %c0_i32_0 : i32, i32
  }
  func.func @transform_4(%arg0: i32) -> (i32, i32) {
    %c0_i32 = arith.constant 0 : i32
    %c0_i32_0 = arith.constant 0 : i32
    %c0_i32_1 = arith.constant 0 : i32
    return %c0_i32, %c0_i32_0 : i32, i32
  }
  func.func @transform_5(%arg0: i32) -> (i32, i32) {
    %c0_i32 = arith.constant 0 : i32
    %c0_i32_0 = arith.constant 0 : i32
    return %arg0, %c0_i32 : i32, i32
  }
}

</mosaic_0001>

<llo_original>
// kernel: _mlp_forward.1
$region0: #{_mlp_forward.1}
  #allocation0 [shape = 'u32[]', space=smem, size = 0x4, offset = 0x4, fixed_abs, tag = 'smem constant byte address 0x4 - core index']
  #allocation1 [shape = 'u32[144,128]{1,0:T(1,128)}', space=vmem, size = 0x12000, scoped, tag = 'internal scratch']
  %s0 = inlined_call_operand.hbm [shape: f32[16,32], index: 0, kind: input, shape index: {}]
  %s1 = inlined_call_operand.hbm [shape: bf16[32,128], index: 1, kind: input, shape index: {}]
  %s2 = inlined_call_operand.vmem [shape: f32[1,128], index: 2, kind: input, shape index: {}]
  %s3 = inlined_call_operand.hbm [shape: bf16[128,256], index: 3, kind: input, shape index: {}]
  %s4 = inlined_call_operand.vmem [shape: f32[1,256], index: 4, kind: input, shape index: {}]
  %s5 = inlined_call_operand.hbm [shape: bf16[16,256], index: 5, kind: output, shape index: {}]
  %s6 = sld [smem:[#allocation0]]
  $region65: #{_mlp_forward.1} parent=0
    _
  %s8 = ssub.s32 1, %s6
  %s9 = scalar_select 0, %s8, %s6
  $region1: #{_mlp_forward.1} parent=0
    #allocation2 [shape = 'u8[8192]{0}', space=vmem, size = 0x2000, scoped, tag = 'input window, operand 0']
    #allocation3 [shape = 's32[2]{0}', space=sflag, size = 0x8, scoped, tag = 'scoped memory for _mlp_forward.1']
    #allocation4 [shape = 's32[2]{0}', space=sflag, size = 0x8, scoped, tag = 'scoped memory for _mlp_forward.1']
    #allocation5 [shape = 'u8[8192]{0}', space=vmem, size = 0x2000, scoped, tag = 'input window, operand 1, single buffered']
    #allocation6 [shape = 's32[1]{0}', space=sflag, size = 0x4, scoped, tag = 'scoped memory for _mlp_forward.1']
    #allocation7 [shape = 'u8[65536]{0}', space=vmem, size = 0x10000, scoped, tag = 'input window, operand 3, single buffered']
    #allocation8 [shape = 'u8[8192]{0}', space=vmem, size = 0x2000, scoped, tag = 'output window, operand 0']
    %10 = vsyncpa [#allocation3], 0
    %s11 = scalar_lea.sflag [#allocation3], 1
    %12 = vsyncpa %s11, 0
    %13 = vsyncpa [#allocation6], 0
    %14 = vsyncpa [#allocation4], 0
    %s15 = scalar_lea.sflag [#allocation4], 1
    %16 = vsyncpa %s15, 0
    loop: start=0, step=1, limit=4
    $region2: #{_mlp_forward.1} parent=1 // loop_pre_header
      _
    $region3: #{_mlp_forward.1} parent=1 // loop_header
      %s18 = sphi 0, %s22
      %p19 = scmp.ge.s32.totalorder %s18, 4
      %s28 = sphi 0, %s30
      %s31 = sphi 0, %s28
      %s32 = sphi 0, %s31
      %s48 = sphi 0, %s32
      %s52 = sphi 0, %s52
      %s54 = sphi 0, %s52
      %s55 = sphi 0, %s54
      %s69 = sphi 0, %s55
      %s73 = sphi 0, %s73
      %s75 = sphi 0, %s73
      %s76 = sphi 0, %s75
      %s90 = sphi 0, %s76
      %s94 = sphi 0, %s94
      %s96 = sphi 0, %s94
      %s97 = sphi 0, %s96
      %s111 = sphi 0, %s97
      %s115 = sphi 0, %s115
      %s117 = sphi 0, %s115
      %s118 = sphi 0, %s117
      %s132 = sphi 0, %s118
      %s138 = sphi 0, %s140
      %s141 = sphi 0, %s138
      %s142 = sphi 0, %s141
      %s158 = sphi 0, %s142
    $region4: #{_mlp_forward.1} parent=1 // loop_header_branch
      %21 = sbr.rel (%p19) target = $region8
    $region5: #{_mlp_forward.1} parent=1 // loop_body
      %s23 = ssub.s32 %s18, 1
      %s24 = ssub.s32 %s18, 2
      %s25 = sadd.s32 %s18, 1
      %s26 = ssub.s32 %s18, %s25
      %p27 = scmp.eq.s32.totalorder %s26, 0
      %s29 = sadd.s32 %s28, 1
      %s30 = scalar_select %p27, %s28, %s29
      %p33 = pneg %p27
      %p34 = scmp.eq.s32.totalorder %s18, 1
      %p35 = por %p33, %p34
      %p36 = scmp.ne.s32.totalorder %s28, %s31
      %p37 = scmp.eq.s32.totalorder %s18, 0
      %p38 = por %p36, %p37
      %p39 = scmp.ne.s32.totalorder %s28, %s31
      %p40 = scmp.eq.s32.totalorder %s23, 1
      %p41 = por %p39, %p40
      %p42 = scmp.ne.s32.totalorder %s31, %s32
      %p43 = scmp.eq.s32.totalorder %s23, 0
      %p44 = por %p42, %p43
      %p45 = scmp.ne.s32.totalorder %s31, %s32
      %p46 = scmp.eq.s32.totalorder %s24, 1
      %p47 = por %p45, %p46
      %p49 = scmp.ne.s32.totalorder %s32, %s48
      %p50 = scmp.eq.s32.totalorder %s24, 0
      %p51 = por %p49, %p50
      %s53 = sadd.s32 %s52, 1
      %p56 = scmp.eq.s32.totalorder %s18, 1
      %p57 = scmp.ne.s32.totalorder %s52, %s54
      %p58 = scmp.eq.s32.totalorder %s18, 0
      %p59 = por %p57, %p58
      %p60 = scmp.ne.s32.totalorder %s52, %s54
      %p61 = scmp.eq.s32.totalorder %s23, 1
      %p62 = por %p60, %p61
      %p63 = scmp.ne.s32.totalorder %s54, %s55
      %p64 = scmp.eq.s32.totalorder %s23, 0
      %p65 = por %p63, %p64
      %p66 = scmp.ne.s32.totalorder %s54, %s55
      %p67 = scmp.eq.s32.totalorder %s24, 1
      %p68 = por %p66, %p67
      %p70 = scmp.ne.s32.totalorder %s55, %s69
      %p71 = scmp.eq.s32.totalorder %s24, 0
      %p72 = por %p70, %p71
      %s74 = sadd.s32 %s73, 1
      %p77 = scmp.eq.s32.totalorder %s18, 1
      %p78 = scmp.ne.s32.totalorder %s73, %s75
      %p79 = scmp.eq.s32.totalorder %s18, 0
      %p80 = por %p78, %p79
      %p81 = scmp.ne.s32.totalorder %s73, %s75
      %p82 = scmp.eq.s32.totalorder %s23, 1
      %p83 = por %p81, %p82
      %p84 = scmp.ne.s32.totalorder %s75, %s76
      %p85 = scmp.eq.s32.totalorder %s23, 0
      %p86 = por %p84, %p85
      %p87 = scmp.ne.s32.totalorder %s75, %s76
      %p88 = scmp.eq.s32.totalorder %s24, 1
      %p89 = por %p87, %p88
      %p91 = scmp.ne.s32.totalorder %s76, %s90
      %p92 = scmp.eq.s32.totalorder %s24, 0
      %p93 = por %p91, %p92
      %s95 = sadd.s32 %s94, 1
      %p98 = scmp.eq.s32.totalorder %s18, 1
      %p99 = scmp.ne.s32.totalorder %s94, %s96
      %p100 = scmp.eq.s32.totalorder %s18, 0
      %p101 = por %p99, %p100
      %p102 = scmp.ne.s32.totalorder %s94, %s96
      %p103 = scmp.eq.s32.totalorder %s23, 1
      %p104 = por %p102, %p103
      %p105 = scmp.ne.s32.totalorder %s96, %s97
      %p106 = scmp.eq.s32.totalorder %s23, 0
      %p107 = por %p105, %p106
      %p108 = scmp.ne.s32.totalorder %s96, %s97
      %p109 = scmp.eq.s32.totalorder %s24, 1
      %p110 = por %p108, %p109
      %p112 = scmp.ne.s32.totalorder %s97, %s111
      %p113 = scmp.eq.s32.totalorder %s24, 0
      %p114 = por %p112, %p113
      %s116 = sadd.s32 %s115, 1
      %p119 = scmp.eq.s32.totalorder %s18, 1
      %p120 = scmp.ne.s32.totalorder %s115, %s117
      %p121 = scmp.eq.s32.totalorder %s18, 0
      %p122 = por %p120, %p121
      %p123 = scmp.ne.s32.totalorder %s115, %s117
      %p124 = scmp.eq.s32.totalorder %s23, 1
      %p125 = por %p123, %p124
      %p126 = scmp.ne.s32.totalorder %s117, %s118
      %p127 = scmp.eq.s32.totalorder %s23, 0
      %p128 = por %p126, %p127
      %p129 = scmp.ne.s32.totalorder %s117, %s118
      %p130 = scmp.eq.s32.totalorder %s24, 1
      %p131 = por %p129, %p130
      %p133 = scmp.ne.s32.totalorder %s118, %s132
      %p134 = scmp.eq.s32.totalorder %s24, 0
      %p135 = por %p133, %p134
      %s136 = ssub.s32 %s18, %s25
      %p137 = scmp.eq.s32.totalorder %s136, 0
      %s139 = sadd.s32 %s138, 1
      %s140 = scalar_select %p137, %s138, %s139
      %p143 = pneg %p137
      %p144 = scmp.eq.s32.totalorder %s18, 1
      %p145 = por %p143, %p144
      %p146 = scmp.ne.s32.totalorder %s138, %s141
      %p147 = scmp.eq.s32.totalorder %s18, 0
      %p148 = por %p146, %p147
      %p149 = scmp.ne.s32.totalorder %s138, %s141
      %p150 = scmp.eq.s32.totalorder %s23, 1
      %p151 = por %p149, %p150
      %p152 = scmp.ne.s32.totalorder %s141, %s142
      %p153 = scmp.eq.s32.totalorder %s23, 0
      %p154 = por %p152, %p153
      %p155 = scmp.ne.s32.totalorder %s141, %s142
      %p156 = scmp.eq.s32.totalorder %s24, 1
      %p157 = por %p155, %p156
      %p159 = scmp.ne.s32.totalorder %s142, %s158
      %p160 = scmp.eq.s32.totalorder %s24, 0
      %p161 = por %p159, %p160
      %p162 = scmp.le.s32.totalorder 1, %s18
      %p163 = scmp.lt.s32.totalorder %s18, 3
      %p164 = pnand %p162, %p163
      %p165 = pneg %p164
      // Predicated region
      $region9: #{_mlp_forward.1} parent=5 // pred_check
        _
      $region10: #{_mlp_forward.1} parent=5 // pred_check_branch
        %167 = sbr.rel (%p164) target = $region12
      $region11: #{_mlp_forward.1} parent=5 // pred_region
        %s168 = ssub.s32 %s18, 1
        // Predicated region
        $region13: #{_mlp_forward.1} parent=11 // pred_check
          %p169 = pneg %p65
        $region14: #{_mlp_forward.1} parent=11 // pred_check_branch
          %171 = sbr.rel (%p169) target = $region16
        $region15: #{_mlp_forward.1} parent=11 // pred_region
          %s173 = ssub.s32 256, 256
          %174 = vsyncadd [#allocation6], %s173
          %s175 = sshll.u32 [#allocation5], 4
          %s176 = int_to_ptr.vmem [resolvable:$true] %s175
          %181 = dma.hbm_to_vmem [thread:$0]  %s1, 256, %s176, [#allocation6], 64, 64, 4
        $region16: #{_mlp_forward.1} parent=11 // pred_fallthru
          _
        // Predicated region
        $region17: #{_mlp_forward.1} parent=11 // pred_check
          %p182 = pneg %p86
        $region18: #{_mlp_forward.1} parent=11 // pred_check_branch
          %184 = sbr.rel (%p182) target = $region20
        $region19: #{_mlp_forward.1} parent=11 // pred_region
          _
        $region20: #{_mlp_forward.1} parent=11 // pred_fallthru
          _
        // Predicated region
        $region21: #{_mlp_forward.1} parent=11 // pred_check
          %p185 = pneg %p107
        $region22: #{_mlp_forward.1} parent=11 // pred_check_branch
          %187 = sbr.rel (%p185) target = $region24
        $region23: #{_mlp_forward.1} parent=11 // pred_region
          %s189 = ssub.s32 2048, 2048
          %190 = vsyncadd [#allocation6], %s189
          %s191 = sshll.u32 [#allocation7], 4
          %s192 = int_to_ptr.vmem [resolvable:$true] %s191
          %197 = dma.hbm_to_vmem [thread:$0]  %s3, 2048, %s192, [#allocation6], 128, 128, 8
        $region24: #{_mlp_forward.1} parent=11 // pred_fallthru
          _
        // Predicated region
        $region25: #{_mlp_forward.1} parent=11 // pred_check
          %p198 = pneg %p128
        $region26: #{_mlp_forward.1} parent=11 // pred_check_branch
          %200 = sbr.rel (%p198) target = $region28
        $region27: #{_mlp_forward.1} parent=11 // pred_region
          _
        $region28: #{_mlp_forward.1} parent=11 // pred_fallthru
          _
      $region12: #{_mlp_forward.1} parent=5 // pred_fallthru
        _
      %p201 = scmp.lt.s32.totalorder %s18, 2
      // Predicated region
      $region29: #{_mlp_forward.1} parent=5 // pred_check
        %p202 = pneg %p201
      $region30: #{_mlp_forward.1} parent=5 // pred_check_branch
        %204 = sbr.rel (%p202) target = $region32
      $region31: #{_mlp_forward.1} parent=5 // pred_region
        // Predicated region
        $region33: #{_mlp_forward.1} parent=31 // pred_check
          %p205 = pneg %p38
        $region34: #{_mlp_forward.1} parent=31 // pred_check_branch
          %207 = sbr.rel (%p205) target = $region36
        $region35: #{_mlp_forward.1} parent=31 // pred_region
          %s208 = sand.u32 %s28, 1
          %s209 = scalar_lea.sflag [#allocation3], %s208
          %s210 = sand.u32 %s28, 1
          %s211 = smul.addr %s210, 8
          %s212 = scalar_lea.vmem [#allocation2], %s211
          %s214 = ssub.s32 128, 128
          %215 = vsyncadd %s209, %s214
          %s216 = smul.addr %s18, 128
          %s217 = scalar_lea.hbm %s0, %s216
          %s219 = sshll.u32 %s212, 4
          %s220 = int_to_ptr.vmem [resolvable:$true] %s219
          %222 = dma.hbm_to_vmem [thread:$0]  %s217, 128, %s220, %s209
        $region36: #{_mlp_forward.1} parent=31 // pred_fallthru
          _
      $region32: #{_mlp_forward.1} parent=5 // pred_fallthru
        _
      %p223 = scmp.le.s32.totalorder 1, %s18
      %p224 = scmp.lt.s32.totalorder %s18, 3
      %p225 = pnand %p223, %p224
      %p226 = pneg %p225
      // Predicated region
      $region37: #{_mlp_forward.1} parent=5 // pred_check
        _
      $region38: #{_mlp_forward.1} parent=5 // pred_check_branch
        %228 = sbr.rel (%p225) target = $region40
      $region39: #{_mlp_forward.1} parent=5 // pred_region
        %s229 = ssub.s32 %s18, 1
        %s230 = sand.u32 %s31, 1
        %s231 = scalar_lea.sflag [#allocation3], %s230
        %s232 = sand.u32 %s31, 1
        %s233 = smul.addr %s232, 8
        %s234 = scalar_lea.vmem [#allocation2], %s233
        // Predicated region
        $region41: #{_mlp_forward.1} parent=39 // pred_check
          %p235 = pneg %p44
        $region42: #{_mlp_forward.1} parent=39 // pred_check_branch
          %237 = sbr.rel (%p235) target = $region44
        $region43: #{_mlp_forward.1} parent=39 // pred_region
          %238 = dma.done %s231, 128
        $region44: #{_mlp_forward.1} parent=39 // pred_fallthru
          _
        // Predicated region
        $region45: #{_mlp_forward.1} parent=39 // pred_check
          %p239 = pneg %p65
        $region46: #{_mlp_forward.1} parent=39 // pred_check_branch
          %241 = sbr.rel (%p239) target = $region48
        $region47: #{_mlp_forward.1} parent=39 // pred_region
          %242 = dma.done [#allocation6], 256
        $region48: #{_mlp_forward.1} parent=39 // pred_fallthru
          _
        // Predicated region
        $region49: #{_mlp_forward.1} parent=39 // pred_check
          %p243 = pneg %p107
        $region50: #{_mlp_forward.1} parent=39 // pred_check_branch
          %245 = sbr.rel (%p243) target = $region52
        $region51: #{_mlp_forward.1} parent=39 // pred_region
          %246 = dma.done [#allocation6], 2048
        $region52: #{_mlp_forward.1} parent=39 // pred_fallthru
          _
        %s247 = sand.u32 %s31, 1
        %s248 = scalar_lea.sflag [#allocation3], %s247
        %s249 = sand.u32 %s31, 1
        %s250 = smul.addr %s249, 8
        %s251 = scalar_lea.vmem [#allocation2], %s250
        %p252 = pneg %p44
        %p253 = pneg %p41
        %p254 = pneg %p65
        %p255 = pneg %p62
        %p256 = pneg %p86
        %p257 = pneg %p83
        %p258 = pneg %p107
        %p259 = pneg %p104
        %p260 = pneg %p128
        %p261 = pneg %p125
        %p262 = pneg %p154
        %p263 = pneg %p151
        %s264 = sand.u32 %s141, 1
        %s265 = scalar_lea.sflag [#allocation4], %s264
        %s266 = sand.u32 %s141, 1
        %s267 = smul.addr %s266, 8
        %s268 = scalar_lea.vmem [#allocation8], %s267
        %v270 = vld [vmem:[%s234] sm:$0xff]
        %v271 = vld [vmem:[#allocation5] sm:$0xf]
        %v272 = vld [vmem:[#allocation5 + $0x4] sm:$0xf]
        %v273 = vld [vmem:[#allocation5 + $0x8] sm:$0xf]
        %v274 = vld [vmem:[#allocation5 + $0xc] sm:$0xf]
        %v275 = vld [vmem:[%s2] sm:$0x1]
        %v276 = vpack.c.bf16 %v270, %v270
        %v278 = vlaneseq
        %v279 = vshrl.u32 %v278, 7
        %v280 = vsub.s32 0, %v279
        %v281 = vrot.slane %v275, %v280
        %v287 = vunpack.c.l.b16 %v271
        %v288 = vunpack.c.l.b16 %v272
        %v289 = vunpack.c.l.b16 %v273
        %v290 = vunpack.c.l.b16 %v274
        %v291 = vpack.c.b16 %v288, %v287
        %v292 = vpack.c.b16 %v290, %v289
        %vm295 = vcmask 261120
        %v297 = vsel %vm295, %v276, 0
        %299 = vmatprep.subr.bf16.mxu0 0
        %300 = vmatpush1.bf16.msra.mxu0 %v291
        %301 = vmatprep.subr.bf16.mxu0 0
        %302 = vmatpush1.bf16.msra.mxu0 %v292
        %303 = vmatprep.subr.bf16.mxu0 0
        %304 = vmatpush1.bf16.msra.mxu0 0
        %305 = vmatprep.subr.bf16.mxu0 0
        %306 = vmatpush1.bf16.msra.mxu0 0
        %307 = vmatprep.subr.bf16.mxu0 0
        %308 = vmatpush1.bf16.msra.mxu0 0
        %309 = vmatprep.subr.bf16.mxu0 0
        %310 = vmatpush1.bf16.msra.mxu0 0
        %311 = vmatprep.subr.bf16.mxu0 0
        %312 = vmatpush1.bf16.msra.mxu0 0
        %313 = vmatprep.subr.bf16.mxu0 0
        %314 = vmatpush1.bf16.msra.mxu0 0
        %315 = vmatprep.subr.bf16.mxu0 0
        %316 = vmatpush1.bf16.msra.mxu0 0
        %317 = vmatprep.subr.bf16.mxu0 0
        %318 = vmatpush1.bf16.msra.mxu0 0
        %319 = vmatprep.subr.bf16.mxu0 0
        %320 = vmatpush1.bf16.msra.mxu0 0
        %321 = vmatprep.subr.bf16.mxu0 0
        %322 = vmatpush1.bf16.msra.mxu0 0
        %323 = vmatprep.subr.bf16.mxu0 0
        %324 = vmatpush1.bf16.msra.mxu0 0
        %325 = vmatprep.subr.bf16.mxu0 0
        %326 = vmatpush1.bf16.msra.mxu0 0
        %327 = vmatprep.subr.bf16.mxu0 0
        %328 = vmatpush1.bf16.msra.mxu0 0
        %329 = vmatprep.subr.bf16.mxu0 0
        %330 = vmatpush1.bf16.msra.mxu0 0
        %331 = vmatprep.mubr.bf16.mxu0 0
        %332 = vmatmul.mubr.bf16.gmra.mrb[0].mxu0 %v297
        %v333 = vpop.f32.mrb[0].mxu0
        %v334 = vadd.f32 %v281, %v333
        %v335 = vpop.f32.mrb[0].mxu0
        %v336 = vpop.f32.mrb[0].mxu0
        %v337 = vpop.f32.mrb[0].mxu0
        %338 = vdwg.mxu0
        %v339 = vmax.f32 %v334, 0.0
        %v340 = vld [vmem:[#allocation7] sm:$0xff]
        %v341 = vld [vmem:[#allocation7 + $0x8] sm:$0xff]
        %v342 = vld [vmem:[#allocation7 + $0x10] sm:$0xff]
        %v343 = vld [vmem:[#allocation7 + $0x18] sm:$0xff]
        %v344 = vld [vmem:[#allocation7 + $0x20] sm:$0xff]
        %v345 = vld [vmem:[#allocation7 + $0x28] sm:$0xff]
        %v346 = vld [vmem:[#allocation7 + $0x30] sm:$0xff]
        %v347 = vld [vmem:[#allocation7 + $0x38] sm:$0xff]
        %v348 = vld [vmem:[#allocation7 + $0x40] sm:$0xff]
        %v349 = vld [vmem:[#allocation7 + $0x48] sm:$0xff]
        %v350 = vld [vmem:[#allocation7 + $0x50] sm:$0xff]
        %v351 = vld [vmem:[#allocation7 + $0x58] sm:$0xff]
        %v352 = vld [vmem:[#allocation7 + $0x60] sm:$0xff]
        %v353 = vld [vmem:[#allocation7 + $0x68] sm:$0xff]
        %v354 = vld [vmem:[#allocation7 + $0x70] sm:$0xff]
        %v355 = vld [vmem:[#allocation7 + $0x78] sm:$0xff]
        %v356 = vld [vmem:[%s4] sm:$0x3]
        %v357 = vpack.c.bf16 %v339, %v339
        %v359 = vlaneseq
        %v360 = vshrl.u32 %v359, 7
        %v361 = vsub.s32 0, %v360
        %v362 = vrot.slane %v356, %v361
        %v363 = vlaneseq
        %v364 = vshrl.u32 %v363, 7
        %v365 = vsub.s32 1, %v364
        %v366 = vrot.slane %v356, %v365
        %v385 = vunpack.c.l.b16 %v340
        %v386 = vunpack.c.h.b16 %v340
        %v387 = vunpack.c.l.b16 %v341
        %v388 = vunpack.c.h.b16 %v341
        %v389 = vunpack.c.l.b16 %v342
        %v390 = vunpack.c.h.b16 %v342
        %v391 = vunpack.c.l.b16 %v343
        %v392 = vunpack.c.h.b16 %v343
        %v393 = vunpack.c.l.b16 %v344
        %v394 = vunpack.c.h.b16 %v344
        %v395 = vunpack.c.l.b16 %v345
        %v396 = vunpack.c.h.b16 %v345
        %v397 = vunpack.c.l.b16 %v346
        %v398 = vunpack.c.h.b16 %v346
        %v399 = vunpack.c.l.b16 %v347
        %v400 = vunpack.c.h.b16 %v347
        %v401 = vunpack.c.l.b16 %v348
        %v402 = vunpack.c.h.b16 %v348
        %v403 = vunpack.c.l.b16 %v349
        %v404 = vunpack.c.h.b16 %v349
        %v405 = vunpack.c.l.b16 %v350
        %v406 = vunpack.c.h.b16 %v350
        %v407 = vunpack.c.l.b16 %v351
        %v408 = vunpack.c.h.b16 %v351
        %v409 = vunpack.c.l.b16 %v352
        %v410 = vunpack.c.h.b16 %v352
        %v411 = vunpack.c.l.b16 %v353
        %v412 = vunpack.c.h.b16 %v353
        %v413 = vunpack.c.l.b16 %v354
        %v414 = vunpack.c.h.b16 %v354
        %v415 = vunpack.c.l.b16 %v355
        %v416 = vunpack.c.h.b16 %v355
        %v417 = vpack.c.b16 %v387, %v385
        %v418 = vpack.c.b16 %v388, %v386
        %v419 = vpack.c.b16 %v391, %v389
        %v420 = vpack.c.b16 %v392, %v390
        %v421 = vpack.c.b16 %v395, %v393
        %v422 = vpack.c.b16 %v396, %v394
        %v423 = vpack.c.b16 %v399, %v397
        %v424 = vpack.c.b16 %v400, %v398
        %v425 = vpack.c.b16 %v403, %v401
        %v426 = vpack.c.b16 %v404, %v402
        %v427 = vpack.c.b16 %v407, %v405
        %v428 = vpack.c.b16 %v408, %v406
        %v429 = vpack.c.b16 %v411, %v409
        %v430 = vpack.c.b16 %v412, %v410
        %v431 = vpack.c.b16 %v415, %v413
        %v432 = vpack.c.b16 %v416, %v414
        %449 = vmatprep.subr.bf16.mxu0 %v418
        %450 = vmatpush1.bf16.msra.mxu0 %v417
        %451 = vmatprep.subr.bf16.mxu0 %v420
        %452 = vmatpush1.bf16.msra.mxu0 %v419
        %453 = vmatprep.subr.bf16.mxu0 %v422
        %454 = vmatpush1.bf16.msra.mxu0 %v421
        %455 = vmatprep.subr.bf16.mxu0 %v424
        %456 = vmatpush1.bf16.msra.mxu0 %v423
        %457 = vmatprep.subr.bf16.mxu0 %v426
        %458 = vmatpush1.bf16.msra.mxu0 %v425
        %459 = vmatprep.subr.bf16.mxu0 %v428
        %460 = vmatpush1.bf16.msra.mxu0 %v427
        %461 = vmatprep.subr.bf16.mxu0 %v430
        %462 = vmatpush1.bf16.msra.mxu0 %v429
        %463 = vmatprep.subr.bf16.mxu0 %v432
        %464 = vmatpush1.bf16.msra.mxu0 %v431
        %465 = vmatprep.subr.bf16.mxu0 0
        %466 = vmatpush1.bf16.msra.mxu0 0
        %467 = vmatprep.subr.bf16.mxu0 0
        %468 = vmatpush1.bf16.msra.mxu0 0
        %469 = vmatprep.subr.bf16.mxu0 0
        %470 = vmatpush1.bf16.msra.mxu0 0
        %471 = vmatprep.subr.bf16.mxu0 0
        %472 = vmatpush1.bf16.msra.mxu0 0
        %473 = vmatprep.subr.bf16.mxu0 0
        %474 = vmatpush1.bf16.msra.mxu0 0
        %475 = vmatprep.subr.bf16.mxu0 0
        %476 = vmatpush1.bf16.msra.mxu0 0
        %477 = vmatprep.subr.bf16.mxu0 0
        %478 = vmatpush1.bf16.msra.mxu0 0
        %479 = vmatprep.subr.bf16.mxu0 0
        %480 = vmatpush1.bf16.msra.mxu0 0
        %481 = vmatprep.mubr.bf16.mxu0 0
        %482 = vmatmul.mubr.bf16.gmra.mrb[0].mxu0 %v357
        %v483 = vpop.f32.mrb[0].mxu0
        %v484 = vadd.f32 %v362, %v483
        %v485 = vpop.f32.mrb[0].mxu0
        %v486 = vadd.f32 %v366, %v485
        %v487 = vpop.f32.mrb[0].mxu0
        %v488 = vpop.f32.mrb[0].mxu0
        %489 = vdwg.mxu0
        %v490 = vmax.f32 %v484, 0.0
        %v491 = vmax.f32 %v486, 0.0
        %v492 = vpack.c.bf16 %v490, %v490
        %v493 = vpack.c.bf16 %v491, %v491
        %v496 = vunpack.c.l.b16 %v492
        %v497 = vunpack.c.l.b16 %v493
        %v498 = vpack.c.b16 %v497, %v496
        %500 = vst [vmem:[%s268] sm:$0xff] %v498
        %s501 = sand.u32 %s141, 1
        %s502 = scalar_lea.sflag [#allocation4], %s501
        %s503 = sand.u32 %s141, 1
        %s504 = smul.addr %s503, 8
        %s505 = scalar_lea.vmem [#allocation8], %s504
        // Predicated region
        $region53: #{_mlp_forward.1} parent=39 // pred_check
          %p506 = pneg %p151
        $region54: #{_mlp_forward.1} parent=39 // pred_check_branch
          %508 = sbr.rel (%p506) target = $region56
        $region55: #{_mlp_forward.1} parent=39 // pred_region
          %s510 = ssub.s32 128, 128
          %511 = vsyncadd %s502, %s510
          %s512 = smul.addr %s23, 2
          %s513 = smul.addr %s512, 64
          %s514 = scalar_lea.hbm %s5, %s513
          %s516 = sshll.u32 %s505, 4
          %s517 = int_to_ptr.vmem [resolvable:$true] %s516
          %519 = dma.vmem_to_hbm [thread:$0]  %s517, 128, %s514, %s502
        $region56: #{_mlp_forward.1} parent=39 // pred_fallthru
          _
      $region40: #{_mlp_forward.1} parent=5 // pred_fallthru
        _
      %p520 = scmp.le.s32.totalorder 2, %s18
      // Predicated region
      $region57: #{_mlp_forward.1} parent=5 // pred_check
        %p521 = pneg %p520
      $region58: #{_mlp_forward.1} parent=5 // pred_check_branch
        %523 = sbr.rel (%p521) target = $region60
      $region59: #{_mlp_forward.1} parent=5 // pred_region
        %s524 = ssub.s32 %s18, 2
        // Predicated region
        $region61: #{_mlp_forward.1} parent=59 // pred_check
          %p525 = pneg %p157
        $region62: #{_mlp_forward.1} parent=59 // pred_check_branch
          %527 = sbr.rel (%p525) target = $region64
        $region63: #{_mlp_forward.1} parent=59 // pred_region
          %s528 = sand.u32 %s142, 1
          %s529 = scalar_lea.sflag [#allocation4], %s528
          %s530 = sand.u32 %s142, 1
          %s531 = smul.addr %s530, 8
          %s532 = scalar_lea.vmem [#allocation8], %s531
          %533 = dma.done %s529, 128
        $region64: #{_mlp_forward.1} parent=59 // pred_fallthru
          _
      $region60: #{_mlp_forward.1} parent=5 // pred_fallthru
        _
    $region6: #{_mlp_forward.1} parent=1 // loop_footer
      %s22 = sadd.s32 1, %s18
    $region7: #{_mlp_forward.1} parent=1 // loop_footer_branch
      %17 = sbr.rel target = $region3
    $region8: #{_mlp_forward.1} parent=1 // loop_exit
      _
    %534 = vsyncpa [#allocation3], 1
    %s535 = scalar_lea.sflag [#allocation3], 1
    %536 = vsyncpa %s535, 1
    %537 = vsyncpa [#allocation6], 1
    %538 = vsyncpa [#allocation4], 1
    %s539 = scalar_lea.sflag [#allocation4], 1
    %540 = vsyncpa %s539, 1

</llo_original>
